<compile_context>
chip_gen: v6e
topology: v6e:2x2x1
jax: 0.10.0
libtpu: 0.0.40
codegen_flags: <defaults>
</compile_context>

<pallas_src>
import jax
import jax.numpy as jnp
from jax.experimental import pallas as pl
from jax.experimental.pallas import tpu as pltpu


def relational_kernel(m_ref, w1_ref, b1_ref, w2_ref, b2_ref, w3_ref, b3_ref, o_ref):
    # x: [in, tm] (N on lanes).  Three MXU matmuls + bias + ReLU, f32 accumulate.
    x = m_ref[...]
    h1 = jnp.dot(w1_ref[...], x, preferred_element_type=jnp.float32) + b1_ref[...]
    h1 = jnp.maximum(h1, 0.0)
    h2 = jnp.dot(w2_ref[...], h1, preferred_element_type=jnp.float32) + b2_ref[...]
    h2 = jnp.maximum(h2, 0.0)
    out = jnp.dot(w3_ref[...], h2, preferred_element_type=jnp.float32) + b3_ref[...]
    o_ref[...] = out.astype(o_ref.dtype)


def _choose_tm(n, tm_max=2048):
    """Pick a lane-axis tile: as large as possible (amortize per-step overhead),
    but keep >=2 grid steps when there is enough work so v7x megacore can shard."""
    n_pad = pl.cdiv(n, 128) * 128
    tm = min(tm_max, n_pad)
    if n_pad >= 2 * 128 and n_pad // tm < 2:
        tm = max(128, (n_pad // 2) // 128 * 128)
    return tm


def relational_model(m, params, *, tm=None):
    """Apply the RelationalModel MLP to m of shape [N, input_size].

    params hold PyTorch-layout weights: W [out, in], b [out].
    """
    (w1, b1), (w2, b2), (w3, b3) = params
    N, in_size = m.shape
    hidden = w1.shape[0]
    out_size = w3.shape[0]

    if tm is None:
        tm = _choose_tm(N)
    assert tm % 128 == 0, "lane tile must be a multiple of 128"

    # Pad the row axis (now the lane axis) to a multiple of tm; zeros are sliced off.
    n_pad = pl.cdiv(N, tm) * tm
    m_t = m.T  # [in_size, N]   (layout plumbing only; tiny relative to the MLP)
    if n_pad != N:
        m_t = jnp.pad(m_t, ((0, 0), (0, n_pad - N)))

    # Biases as column vectors so they broadcast over the lane (row) axis.
    b1c = b1.reshape(hidden, 1)
    b2c = b2.reshape(hidden, 1)
    b3c = b3.reshape(out_size, 1)

    grid = (n_pad // tm,)

    # VMEM budget: (in+out) tiles are a few hundred KiB even at tm=2048 with
    # double-buffering, far under the 32 MiB scoped default on v5e/v6e/v7x,
    # so no vmem_limit_bytes override is needed at these feature sizes.
    out_t = pl.pallas_call(
        relational_kernel,
        out_shape=jax.ShapeDtypeStruct((out_size, n_pad), m.dtype),
        grid_spec=pltpu.PrefetchScalarGridSpec(
            num_scalar_prefetch=0,
            grid=grid,
            in_specs=[
                pl.BlockSpec((in_size, tm), lambda i: (0, i)),       # m^T lane tile
                pl.BlockSpec((hidden, in_size), lambda i: (0, 0)),   # W1 (resident)
                pl.BlockSpec((hidden, 1), lambda i: (0, 0)),         # b1
                pl.BlockSpec((hidden, hidden), lambda i: (0, 0)),    # W2
                pl.BlockSpec((hidden, 1), lambda i: (0, 0)),         # b2
                pl.BlockSpec((out_size, hidden), lambda i: (0, 0)),  # W3
                pl.BlockSpec((out_size, 1), lambda i: (0, 0)),       # b3
            ],
            out_specs=pl.BlockSpec((out_size, tm), lambda i: (0, i)),
        ),
        compiler_params=pltpu.CompilerParams(
            dimension_semantics=("parallel",),
        ),
    )(m_t, w1, b1c, w2, b2c, w3, b3c)

    # Back to the module's [N, out_size] layout, dropping the padded rows.
    return out_t.T[:N]


def init_params(key, input_size, hidden_size, output_size, dtype=jnp.float32):
    """PyTorch-Linear-style init: W [out, in], b [out], uniform +/- 1/sqrt(fan_in)."""
    def linear(key, fan_in, fan_out):
        kw, kb = jax.random.split(key)
        bound = 1.0 / jnp.sqrt(fan_in)
        w = jax.random.uniform(kw, (fan_out, fan_in), dtype, -bound, bound)
        b = jax.random.uniform(kb, (fan_out,), dtype, -bound, bound)
        return w, b

    k1, k2, k3 = jax.random.split(key, 3)
    return (
        linear(k1, input_size, hidden_size),
        linear(k2, hidden_size, hidden_size),
        linear(k3, hidden_size, output_size),
    )


def reference_model(m, params):
    (w1, b1), (w2, b2), (w3, b3) = params
    h = jnp.maximum(m @ w1.T + b1, 0.0)
    h = jnp.maximum(h @ w2.T + b2, 0.0)
    return h @ w3.T + b3


if __name__ == "__main__":
    # Shapes consistent with RelationalModel inside the interaction network:
    # m is [num_edges, input_size] with small feature dims.
    N, input_size, hidden_size, output_size = 1024, 6, 32, 4

    key = jax.random.PRNGKey(0)
    k_m, k_p = jax.random.split(key)
    m = jax.random.normal(k_m, (N, input_size), dtype=jnp.float32)
    params = init_params(k_p, input_size, hidden_size, output_size)

    out = relational_model(m, params)          # auto tm -> 512, grid=(2,) parallel
    out = jax.block_until_ready(out)

    ref = reference_model(m, params)
    assert out.shape == (N, output_size)
    assert jnp.allclose(out, ref, atol=1e-4, rtol=1e-4)

    # Also exercise a non-multiple row count (tail padding path).
    m2 = jax.random.normal(k_m, (N - 37, input_size), dtype=jnp.float32)
    out2 = jax.block_until_ready(relational_model(m2, params))
    assert jnp.allclose(out2, reference_model(m2, params), atol=1e-4, rtol=1e-4)

    print("KERNEL_OK")
</pallas_src>

<mosaic_0001>
module attributes {stable_mosaic.version = 11 : i64} {
  func.func @relational_kernel(%arg0: i32, %arg1: memref<6x512xf32, #tpu.memory_space<vmem>>, %arg2: memref<32x6xf32, #tpu.memory_space<vmem>>, %arg3: memref<32x1xf32, #tpu.memory_space<vmem>>, %arg4: memref<32x32xf32, #tpu.memory_space<vmem>>, %arg5: memref<32x1xf32, #tpu.memory_space<vmem>>, %arg6: memref<4x32xf32, #tpu.memory_space<vmem>>, %arg7: memref<4x1xf32, #tpu.memory_space<vmem>>, %arg8: memref<4x512xf32, #tpu.memory_space<vmem>>) attributes {dimension_semantics = [#tpu.dimension_semantics<parallel>], iteration_bounds = array<i64: 2>, scalar_prefetch = 0 : i64, scratch_operands = 0 : i64, tpu.core_type = #tpu.core_type<tc>, window_params = [{transform_indices = @transform_0, window_bounds = array<i64: 6, 512>}, {pipeline_mode = #tpu.pipeline_mode<synchronous>, transform_indices = @transform_1, window_bounds = array<i64: 32, 6>}, {pipeline_mode = #tpu.pipeline_mode<synchronous>, transform_indices = @transform_2, window_bounds = array<i64: 32, 1>}, {pipeline_mode = #tpu.pipeline_mode<synchronous>, transform_indices = @transform_3, window_bounds = array<i64: 32, 32>}, {pipeline_mode = #tpu.pipeline_mode<synchronous>, transform_indices = @transform_4, window_bounds = array<i64: 32, 1>}, {pipeline_mode = #tpu.pipeline_mode<synchronous>, transform_indices = @transform_5, window_bounds = array<i64: 4, 32>}, {pipeline_mode = #tpu.pipeline_mode<synchronous>, transform_indices = @transform_6, window_bounds = array<i64: 4, 1>}, {transform_indices = @transform_7, window_bounds = array<i64: 4, 512>}]} {
    %c0 = arith.constant 0 : index
    %c0_0 = arith.constant 0 : index
    %0 = vector.load %arg1[%c0, %c0_0] : memref<6x512xf32, #tpu.memory_space<vmem>>, vector<6x512xf32>
    %c0_1 = arith.constant 0 : index
    %c0_2 = arith.constant 0 : index
    %1 = vector.load %arg2[%c0_1, %c0_2] : memref<32x6xf32, #tpu.memory_space<vmem>>, vector<32x6xf32>
    %cst = arith.constant dense<0.000000e+00> : vector<32x512xf32>
    %2 = tpu.matmul %1, %0, %cst {dimension_numbers = #tpu.dot_dimension_numbers<[1], [0], [0], [1], [0, 0, 1, 1], [], []>} : vector<32x6xf32>, vector<6x512xf32>, vector<32x512xf32> -> vector<32x512xf32>
    %c0_3 = arith.constant 0 : index
    %c0_4 = arith.constant 0 : index
    %3 = vector.load %arg3[%c0_3, %c0_4] : memref<32x1xf32, #tpu.memory_space<vmem>>, vector<32x1xf32>
    %4 = vector.broadcast %3 : vector<32x1xf32> to vector<32x512xf32>
    %5 = arith.addf %2, %4 : vector<32x512xf32>
    %cst_5 = arith.constant 0.000000e+00 : f32
    %6 = vector.broadcast %cst_5 : f32 to vector<32x512xf32>
    %7 = arith.maximumf %5, %6 : vector<32x512xf32>
    %c0_6 = arith.constant 0 : index
    %c0_7 = arith.constant 0 : index
    %8 = vector.load %arg4[%c0_6, %c0_7] : memref<32x32xf32, #tpu.memory_space<vmem>>, vector<32x32xf32>
    %cst_8 = arith.constant dense<0.000000e+00> : vector<32x512xf32>
    %9 = tpu.matmul %8, %7, %cst_8 {dimension_numbers = #tpu.dot_dimension_numbers<[1], [0], [0], [1], [0, 0, 1, 1], [], []>} : vector<32x32xf32>, vector<32x512xf32>, vector<32x512xf32> -> vector<32x512xf32>
    %c0_9 = arith.constant 0 : index
    %c0_10 = arith.constant 0 : index
    %10 = vector.load %arg5[%c0_9, %c0_10] : memref<32x1xf32, #tpu.memory_space<vmem>>, vector<32x1xf32>
    %11 = vector.broadcast %10 : vector<32x1xf32> to vector<32x512xf32>
    %12 = arith.addf %9, %11 : vector<32x512xf32>
    %cst_11 = arith.constant 0.000000e+00 : f32
    %13 = vector.broadcast %cst_11 : f32 to vector<32x512xf32>
    %14 = arith.maximumf %12, %13 : vector<32x512xf32>
    %c0_12 = arith.constant 0 : index
    %c0_13 = arith.constant 0 : index
    %15 = vector.load %arg6[%c0_12, %c0_13] : memref<4x32xf32, #tpu.memory_space<vmem>>, vector<4x32xf32>
    %cst_14 = arith.constant dense<0.000000e+00> : vector<4x512xf32>
    %16 = tpu.matmul %15, %14, %cst_14 {dimension_numbers = #tpu.dot_dimension_numbers<[1], [0], [0], [1], [0, 0, 1, 1], [], []>} : vector<4x32xf32>, vector<32x512xf32>, vector<4x512xf32> -> vector<4x512xf32>
    %c0_15 = arith.constant 0 : index
    %c0_16 = arith.constant 0 : index
    %17 = vector.load %arg7[%c0_15, %c0_16] : memref<4x1xf32, #tpu.memory_space<vmem>>, vector<4x1xf32>
    %18 = vector.broadcast %17 : vector<4x1xf32> to vector<4x512xf32>
    %19 = arith.addf %16, %18 : vector<4x512xf32>
    %c0_17 = arith.constant 0 : index
    %c0_18 = arith.constant 0 : index
    %20 = vector.load %arg8[%c0_17, %c0_18] : memref<4x512xf32, #tpu.memory_space<vmem>>, vector<4x512xf32>
    tpu.vector_store %arg8[%c0_17, %c0_18], %19 {strides = array<i32>} : memref<4x512xf32, #tpu.memory_space<vmem>>, vector<4x512xf32>,
    return
  }
  func.func @transform_0(%arg0: i32) -> (i32, i32) {
    %c0_i32 = arith.constant 0 : i32
    %c0_i32_0 = arith.constant 0 : i32
    return %c0_i32, %arg0 : i32, i32
  }
  func.func @transform_1(%arg0: i32) -> (i32, i32) {
    %c0_i32 = arith.constant 0 : i32
    %c0_i32_0 = arith.constant 0 : i32
    %c0_i32_1 = arith.constant 0 : i32
    return %c0_i32, %c0_i32_0 : i32, i32
  }
  func.func @transform_2(%arg0: i32) -> (i32, i32) {
    %c0_i32 = arith.constant 0 : i32
    %c0_i32_0 = arith.constant 0 : i32
    %c0_i32_1 = arith.constant 0 : i32
    return %c0_i32, %c0_i32_0 : i32, i32
  }
  func.func @transform_3(%arg0: i32) -> (i32, i32) {
    %c0_i32 = arith.constant 0 : i32
    %c0_i32_0 = arith.constant 0 : i32
    %c0_i32_1 = arith.constant 0 : i32
    return %c0_i32, %c0_i32_0 : i32, i32
  }
  func.func @transform_4(%arg0: i32) -> (i32, i32) {
    %c0_i32 = arith.constant 0 : i32
    %c0_i32_0 = arith.constant 0 : i32
    %c0_i32_1 = arith.constant 0 : i32
    return %c0_i32, %c0_i32_0 : i32, i32
  }
  func.func @transform_5(%arg0: i32) -> (i32, i32) {
    %c0_i32 = arith.constant 0 : i32
    %c0_i32_0 = arith.constant 0 : i32
    %c0_i32_1 = arith.constant 0 : i32
    return %c0_i32, %c0_i32_0 : i32, i32
  }
  func.func @transform_6(%arg0: i32) -> (i32, i32) {
    %c0_i32 = arith.constant 0 : i32
    %c0_i32_0 = arith.constant 0 : i32
    %c0_i32_1 = arith.constant 0 : i32
    return %c0_i32, %c0_i32_0 : i32, i32
  }
  func.func @transform_7(%arg0: i32) -> (i32, i32) {
    %c0_i32 = arith.constant 0 : i32
    %c0_i32_0 = arith.constant 0 : i32
    return %c0_i32, %arg0 : i32, i32
  }
}

</mosaic_0001>

<llo_original>
// kernel: tpu_custom_call.1
$region0: #{tpu_custom_call.1}
  #allocation0 [shape = 'u32[]', space=smem, size = 0x4, offset = 0x4, fixed_abs, tag = 'smem constant byte address 0x4 - core index']
  #allocation1 [shape = 'u32[144,128]{1,0:T(1,128)}', space=vmem, size = 0x12000, scoped, tag = 'internal scratch']
  %s0 = inlined_call_operand.vmem [shape: f32[6,1024], index: 0, kind: input, shape index: {}]
  %s1 = inlined_call_operand.vmem [shape: f32[32,6], index: 1, kind: input, shape index: {}]
  %s2 = inlined_call_operand.vmem [shape: f32[32,1], index: 2, kind: input, shape index: {}]
  %s3 = inlined_call_operand.vmem [shape: f32[32,32], index: 3, kind: input, shape index: {}]
  %s4 = inlined_call_operand.vmem [shape: f32[32,1], index: 4, kind: input, shape index: {}]
  %s5 = inlined_call_operand.vmem [shape: f32[4,32], index: 5, kind: input, shape index: {}]
  %s6 = inlined_call_operand.vmem [shape: f32[4,1], index: 6, kind: input, shape index: {}]
  %s7 = inlined_call_operand.hbm [shape: f32[4,1024], index: 7, kind: output, shape index: {}]
  %s8 = sld [smem:[#allocation0]]
  $region61: #{tpu_custom_call.1} parent=0
    _
  %s10 = ssub.s32 1, %s8
  %s11 = scalar_select 0, %s10, %s8
  $region1: #{tpu_custom_call.1} parent=0
    #allocation2 [shape = 'u8[16384]{0}', space=vmem, size = 0x4000, scoped, tag = 'output window, operand 0']
    #allocation3 [shape = 's32[2]{0}', space=sflag, size = 0x8, scoped, tag = 'scoped memory for tpu_custom_call.1']
    %12 = vsyncpa [#allocation3], 0
    %s13 = scalar_lea.sflag [#allocation3], 1
    %14 = vsyncpa %s13, 0
    loop: start=0, step=1, limit=4
    $region2: #{tpu_custom_call.1} parent=1 // loop_pre_header
      _
    $region3: #{tpu_custom_call.1} parent=1 // loop_header
      %s16 = sphi 0, %s20
      %p17 = scmp.ge.s32.totalorder %s16, 4
      %s26 = sphi 0, %s28
      %s29 = sphi 0, %s26
      %s30 = sphi 0, %s29
      %s46 = sphi 0, %s30
      %s50 = sphi 0, %s50
      %s52 = sphi 0, %s50
      %s53 = sphi 0, %s52
      %s67 = sphi 0, %s53
      %s71 = sphi 0, %s71
      %s73 = sphi 0, %s71
      %s74 = sphi 0, %s73
      %s88 = sphi 0, %s74
      %s92 = sphi 0, %s92
      %s94 = sphi 0, %s92
      %s95 = sphi 0, %s94
      %s109 = sphi 0, %s95
      %s113 = sphi 0, %s113
      %s115 = sphi 0, %s113
      %s116 = sphi 0, %s115
      %s130 = sphi 0, %s116
      %s134 = sphi 0, %s134
      %s136 = sphi 0, %s134
      %s137 = sphi 0, %s136
      %s151 = sphi 0, %s137
      %s155 = sphi 0, %s155
      %s157 = sphi 0, %s155
      %s158 = sphi 0, %s157
      %s172 = sphi 0, %s158
      %s178 = sphi 0, %s180
      %s181 = sphi 0, %s178
      %s182 = sphi 0, %s181
      %s198 = sphi 0, %s182
    $region4: #{tpu_custom_call.1} parent=1 // loop_header_branch
      %19 = sbr.rel (%p17) target = $region8
    $region5: #{tpu_custom_call.1} parent=1 // loop_body
      %s21 = ssub.s32 %s16, 1
      %s22 = ssub.s32 %s16, 2
      %s23 = sadd.s32 %s16, 1
      %s24 = ssub.s32 %s16, %s23
      %p25 = scmp.eq.s32.totalorder %s24, 0
      %s27 = sadd.s32 %s26, 1
      %s28 = scalar_select %p25, %s26, %s27
      %p31 = pneg %p25
      %p32 = scmp.eq.s32.totalorder %s16, 1
      %p33 = por %p31, %p32
      %p34 = scmp.ne.s32.totalorder %s26, %s29
      %p35 = scmp.eq.s32.totalorder %s16, 0
      %p36 = por %p34, %p35
      %p37 = scmp.ne.s32.totalorder %s26, %s29
      %p38 = scmp.eq.s32.totalorder %s21, 1
      %p39 = por %p37, %p38
      %p40 = scmp.ne.s32.totalorder %s29, %s30
      %p41 = scmp.eq.s32.totalorder %s21, 0
      %p42 = por %p40, %p41
      %p43 = scmp.ne.s32.totalorder %s29, %s30
      %p44 = scmp.eq.s32.totalorder %s22, 1
      %p45 = por %p43, %p44
      %p47 = scmp.ne.s32.totalorder %s30, %s46
      %p48 = scmp.eq.s32.totalorder %s22, 0
      %p49 = por %p47, %p48
      %s51 = sadd.s32 %s50, 1
      %p54 = scmp.eq.s32.totalorder %s16, 1
      %p55 = scmp.ne.s32.totalorder %s50, %s52
      %p56 = scmp.eq.s32.totalorder %s16, 0
      %p57 = por %p55, %p56
      %p58 = scmp.ne.s32.totalorder %s50, %s52
      %p59 = scmp.eq.s32.totalorder %s21, 1
      %p60 = por %p58, %p59
      %p61 = scmp.ne.s32.totalorder %s52, %s53
      %p62 = scmp.eq.s32.totalorder %s21, 0
      %p63 = por %p61, %p62
      %p64 = scmp.ne.s32.totalorder %s52, %s53
      %p65 = scmp.eq.s32.totalorder %s22, 1
      %p66 = por %p64, %p65
      %p68 = scmp.ne.s32.totalorder %s53, %s67
      %p69 = scmp.eq.s32.totalorder %s22, 0
      %p70 = por %p68, %p69
      %s72 = sadd.s32 %s71, 1
      %p75 = scmp.eq.s32.totalorder %s16, 1
      %p76 = scmp.ne.s32.totalorder %s71, %s73
      %p77 = scmp.eq.s32.totalorder %s16, 0
      %p78 = por %p76, %p77
      %p79 = scmp.ne.s32.totalorder %s71, %s73
      %p80 = scmp.eq.s32.totalorder %s21, 1
      %p81 = por %p79, %p80
      %p82 = scmp.ne.s32.totalorder %s73, %s74
      %p83 = scmp.eq.s32.totalorder %s21, 0
      %p84 = por %p82, %p83
      %p85 = scmp.ne.s32.totalorder %s73, %s74
      %p86 = scmp.eq.s32.totalorder %s22, 1
      %p87 = por %p85, %p86
      %p89 = scmp.ne.s32.totalorder %s74, %s88
      %p90 = scmp.eq.s32.totalorder %s22, 0
      %p91 = por %p89, %p90
      %s93 = sadd.s32 %s92, 1
      %p96 = scmp.eq.s32.totalorder %s16, 1
      %p97 = scmp.ne.s32.totalorder %s92, %s94
      %p98 = scmp.eq.s32.totalorder %s16, 0
      %p99 = por %p97, %p98
      %p100 = scmp.ne.s32.totalorder %s92, %s94
      %p101 = scmp.eq.s32.totalorder %s21, 1
      %p102 = por %p100, %p101
      %p103 = scmp.ne.s32.totalorder %s94, %s95
      %p104 = scmp.eq.s32.totalorder %s21, 0
      %p105 = por %p103, %p104
      %p106 = scmp.ne.s32.totalorder %s94, %s95
      %p107 = scmp.eq.s32.totalorder %s22, 1
      %p108 = por %p106, %p107
      %p110 = scmp.ne.s32.totalorder %s95, %s109
      %p111 = scmp.eq.s32.totalorder %s22, 0
      %p112 = por %p110, %p111
      %s114 = sadd.s32 %s113, 1
      %p117 = scmp.eq.s32.totalorder %s16, 1
      %p118 = scmp.ne.s32.totalorder %s113, %s115
      %p119 = scmp.eq.s32.totalorder %s16, 0
      %p120 = por %p118, %p119
      %p121 = scmp.ne.s32.totalorder %s113, %s115
      %p122 = scmp.eq.s32.totalorder %s21, 1
      %p123 = por %p121, %p122
      %p124 = scmp.ne.s32.totalorder %s115, %s116
      %p125 = scmp.eq.s32.totalorder %s21, 0
      %p126 = por %p124, %p125
      %p127 = scmp.ne.s32.totalorder %s115, %s116
      %p128 = scmp.eq.s32.totalorder %s22, 1
      %p129 = por %p127, %p128
      %p131 = scmp.ne.s32.totalorder %s116, %s130
      %p132 = scmp.eq.s32.totalorder %s22, 0
      %p133 = por %p131, %p132
      %s135 = sadd.s32 %s134, 1
      %p138 = scmp.eq.s32.totalorder %s16, 1
      %p139 = scmp.ne.s32.totalorder %s134, %s136
      %p140 = scmp.eq.s32.totalorder %s16, 0
      %p141 = por %p139, %p140
      %p142 = scmp.ne.s32.totalorder %s134, %s136
      %p143 = scmp.eq.s32.totalorder %s21, 1
      %p144 = por %p142, %p143
      %p145 = scmp.ne.s32.totalorder %s136, %s137
      %p146 = scmp.eq.s32.totalorder %s21, 0
      %p147 = por %p145, %p146
      %p148 = scmp.ne.s32.totalorder %s136, %s137
      %p149 = scmp.eq.s32.totalorder %s22, 1
      %p150 = por %p148, %p149
      %p152 = scmp.ne.s32.totalorder %s137, %s151
      %p153 = scmp.eq.s32.totalorder %s22, 0
      %p154 = por %p152, %p153
      %s156 = sadd.s32 %s155, 1
      %p159 = scmp.eq.s32.totalorder %s16, 1
      %p160 = scmp.ne.s32.totalorder %s155, %s157
      %p161 = scmp.eq.s32.totalorder %s16, 0
      %p162 = por %p160, %p161
      %p163 = scmp.ne.s32.totalorder %s155, %s157
      %p164 = scmp.eq.s32.totalorder %s21, 1
      %p165 = por %p163, %p164
      %p166 = scmp.ne.s32.totalorder %s157, %s158
      %p167 = scmp.eq.s32.totalorder %s21, 0
      %p168 = por %p166, %p167
      %p169 = scmp.ne.s32.totalorder %s157, %s158
      %p170 = scmp.eq.s32.totalorder %s22, 1
      %p171 = por %p169, %p170
      %p173 = scmp.ne.s32.totalorder %s158, %s172
      %p174 = scmp.eq.s32.totalorder %s22, 0
      %p175 = por %p173, %p174
      %s176 = ssub.s32 %s16, %s23
      %p177 = scmp.eq.s32.totalorder %s176, 0
      %s179 = sadd.s32 %s178, 1
      %s180 = scalar_select %p177, %s178, %s179
      %p183 = pneg %p177
      %p184 = scmp.eq.s32.totalorder %s16, 1
      %p185 = por %p183, %p184
      %p186 = scmp.ne.s32.totalorder %s178, %s181
      %p187 = scmp.eq.s32.totalorder %s16, 0
      %p188 = por %p186, %p187
      %p189 = scmp.ne.s32.totalorder %s178, %s181
      %p190 = scmp.eq.s32.totalorder %s21, 1
      %p191 = por %p189, %p190
      %p192 = scmp.ne.s32.totalorder %s181, %s182
      %p193 = scmp.eq.s32.totalorder %s21, 0
      %p194 = por %p192, %p193
      %p195 = scmp.ne.s32.totalorder %s181, %s182
      %p196 = scmp.eq.s32.totalorder %s22, 1
      %p197 = por %p195, %p196
      %p199 = scmp.ne.s32.totalorder %s182, %s198
      %p200 = scmp.eq.s32.totalorder %s22, 0
      %p201 = por %p199, %p200
      %p202 = scmp.le.s32.totalorder 1, %s16
      %p203 = scmp.lt.s32.totalorder %s16, 3
      %p204 = pnand %p202, %p203
      %p205 = pneg %p204
      // Predicated region
      $region9: #{tpu_custom_call.1} parent=5 // pred_check
        _
      $region10: #{tpu_custom_call.1} parent=5 // pred_check_branch
        %207 = sbr.rel (%p204) target = $region12
      $region11: #{tpu_custom_call.1} parent=5 // pred_region
        %s208 = ssub.s32 %s16, 1
        // Predicated region
        $region13: #{tpu_custom_call.1} parent=11 // pred_check
          %p209 = pneg %p63
        $region14: #{tpu_custom_call.1} parent=11 // pred_check_branch
          %211 = sbr.rel (%p209) target = $region16
        $region15: #{tpu_custom_call.1} parent=11 // pred_region
          _
        $region16: #{tpu_custom_call.1} parent=11 // pred_fallthru
          _
        // Predicated region
        $region17: #{tpu_custom_call.1} parent=11 // pred_check
          %p212 = pneg %p84
        $region18: #{tpu_custom_call.1} parent=11 // pred_check_branch
          %214 = sbr.rel (%p212) target = $region20
        $region19: #{tpu_custom_call.1} parent=11 // pred_region
          _
        $region20: #{tpu_custom_call.1} parent=11 // pred_fallthru
          _
        // Predicated region
        $region21: #{tpu_custom_call.1} parent=11 // pred_check
          %p215 = pneg %p105
        $region22: #{tpu_custom_call.1} parent=11 // pred_check_branch
          %217 = sbr.rel (%p215) target = $region24
        $region23: #{tpu_custom_call.1} parent=11 // pred_region
          _
        $region24: #{tpu_custom_call.1} parent=11 // pred_fallthru
          _
        // Predicated region
        $region25: #{tpu_custom_call.1} parent=11 // pred_check
          %p218 = pneg %p126
        $region26: #{tpu_custom_call.1} parent=11 // pred_check_branch
          %220 = sbr.rel (%p218) target = $region28
        $region27: #{tpu_custom_call.1} parent=11 // pred_region
          _
        $region28: #{tpu_custom_call.1} parent=11 // pred_fallthru
          _
        // Predicated region
        $region29: #{tpu_custom_call.1} parent=11 // pred_check
          %p221 = pneg %p147
        $region30: #{tpu_custom_call.1} parent=11 // pred_check_branch
          %223 = sbr.rel (%p221) target = $region32
        $region31: #{tpu_custom_call.1} parent=11 // pred_region
          _
        $region32: #{tpu_custom_call.1} parent=11 // pred_fallthru
          _
        // Predicated region
        $region33: #{tpu_custom_call.1} parent=11 // pred_check
          %p224 = pneg %p168
        $region34: #{tpu_custom_call.1} parent=11 // pred_check_branch
          %226 = sbr.rel (%p224) target = $region36
        $region35: #{tpu_custom_call.1} parent=11 // pred_region
          _
        $region36: #{tpu_custom_call.1} parent=11 // pred_fallthru
          _
      $region12: #{tpu_custom_call.1} parent=5 // pred_fallthru
        _
      %p227 = scmp.lt.s32.totalorder %s16, 2
      // Predicated region
      $region37: #{tpu_custom_call.1} parent=5 // pred_check
        %p228 = pneg %p227
      $region38: #{tpu_custom_call.1} parent=5 // pred_check_branch
        %230 = sbr.rel (%p228) target = $region40
      $region39: #{tpu_custom_call.1} parent=5 // pred_region
        // Predicated region
        $region41: #{tpu_custom_call.1} parent=39 // pred_check
          %p231 = pneg %p36
        $region42: #{tpu_custom_call.1} parent=39 // pred_check_branch
          %233 = sbr.rel (%p231) target = $region44
        $region43: #{tpu_custom_call.1} parent=39 // pred_region
          %s234 = smul.u32 4, %s16
          %p235 = scmp.lt.s32.totalorder %s234, 7
          %s236 = scalar_select %p235, %s234, 7
          %s237 = smul.addr %s236, 8
          %s238 = scalar_lea.vmem %s0, %s237
          %s239 = smul.u32 4, %s16
        $region44: #{tpu_custom_call.1} parent=39 // pred_fallthru
          _
      $region40: #{tpu_custom_call.1} parent=5 // pred_fallthru
        _
      %p240 = scmp.le.s32.totalorder 1, %s16
      %p241 = scmp.lt.s32.totalorder %s16, 3
      %p242 = pnand %p240, %p241
      %p243 = pneg %p242
      // Predicated region
      $region45: #{tpu_custom_call.1} parent=5 // pred_check
        _
      $region46: #{tpu_custom_call.1} parent=5 // pred_check_branch
        %245 = sbr.rel (%p242) target = $region48
      $region47: #{tpu_custom_call.1} parent=5 // pred_region
        %s246 = ssub.s32 %s16, 1
        %s247 = smul.u32 4, %s21
        %p248 = scmp.lt.s32.totalorder %s247, 7
        %s249 = scalar_select %p248, %s247, 7
        %s250 = smul.addr %s249, 8
        %s251 = scalar_lea.vmem %s0, %s250
        %p252 = pneg %p42
        %p253 = pneg %p39
        %p254 = pneg %p63
        %p255 = pneg %p60
        %p256 = pneg %p84
        %p257 = pneg %p81
        %p258 = pneg %p105
        %p259 = pneg %p102
        %p260 = pneg %p126
        %p261 = pneg %p123
        %p262 = pneg %p147
        %p263 = pneg %p144
        %p264 = pneg %p168
        %p265 = pneg %p165
        %p266 = pneg %p194
        %p267 = pneg %p191
        %s268 = sand.u32 %s181, 1
        %s269 = scalar_lea.sflag [#allocation3], %s268
        %s270 = sand.u32 %s181, 1
        %s271 = smul.addr %s270, 16
        %s272 = scalar_lea.vmem [#allocation2], %s271
        %s273 = smul.u32 4, %s21
        %p274 = scmp.lt.s32.totalorder %s273, 7
        %s275 = scalar_select %p274, %s273, 7
        %s276 = smul.addr %s275, 8
        %s277 = scalar_lea.vmem %s0, %s276
        %s278 = smul.u32 4, %s21
        %s279 = smul.u32 4, %s21
        %v280 = vld [vmem:[%s277] sm:$0x3f]
        %v281 = vld [vmem:[%s277 + $0x8] sm:$0x3f]
        %v282 = vld [vmem:[%s277 + $0x10] sm:$0x3f]
        %v283 = vld [vmem:[%s277 + $0x18] sm:$0x3f]
        %v284 = vld [vmem:[%s1] sm:$0xff]
        %v285 = vld [vmem:[%s1 + $0x8] sm:$0xff]
        %v286 = vld [vmem:[%s1 + $0x10] sm:$0xff]
        %v287 = vld [vmem:[%s1 + $0x18] sm:$0xff]
        %v288 = vld [vmem:[%s2] sm:$0xff]
        %v289 = vld [vmem:[%s2 + $0x8] sm:$0xff]
        %v290 = vld [vmem:[%s2 + $0x10] sm:$0xff]
        %v291 = vld [vmem:[%s2 + $0x18] sm:$0xff]
        %293 = vset.pattern.permute.xlu0 0
        %294 = vperm.xlu0 %293, %v288
        %v295 = vpop.permute.xlu0 %294
        %298 = vset.pattern.permute.xlu0 0
        %299 = vperm.xlu0 %298, %v289
        %v300 = vpop.permute.xlu0 %299
        %303 = vset.pattern.permute.xlu0 0
        %304 = vperm.xlu0 %303, %v290
        %v305 = vpop.permute.xlu0 %304
        %308 = vset.pattern.permute.xlu0 0
        %309 = vperm.xlu0 %308, %v291
        %v310 = vpop.permute.xlu0 %309
        %vm312 = vcmask 48128
        %v314 = vsel %vm312, %v284, 0
        %v317 = vsel %vm312, %v285, 0
        %v320 = vsel %vm312, %v286, 0
        %v323 = vsel %vm312, %v287, 0
        %vm325 = vcmask 1045504
        %v327 = vsel %vm325, %v280, 0
        %v330 = vsel %vm325, %v281, 0
        %v333 = vsel %vm325, %v282, 0
        %v336 = vsel %vm325, %v283, 0
        %338 = vmatprep.subr.mxu0 0.0
        %339 = vmatpush1.msra.mxu0 0.0
        %340 = vmatprep.subr.mxu0 0.0
        %341 = vmatpush1.msra.mxu0 0.0
        %342 = vmatprep.subr.mxu0 0.0
        %343 = vmatpush1.msra.mxu0 0.0
        %344 = vmatprep.subr.mxu0 0.0
        %345 = vmatpush1.msra.mxu0 0.0
        %346 = vmatprep.subr.mxu0 0.0
        %347 = vmatpush1.msra.mxu0 0.0
        %348 = vmatprep.subr.mxu0 0.0
        %349 = vmatpush1.msra.mxu0 0.0
        %350 = vmatprep.subr.mxu0 0.0
        %351 = vmatpush1.msra.mxu0 0.0
        %352 = vmatprep.subr.mxu0 0.0
        %353 = vmatpush1.msra.mxu0 0.0
        %354 = vmatprep.subr.mxu0 0.0
        %355 = vmatpush1.msra.mxu0 0.0
        %356 = vmatprep.subr.mxu0 0.0
        %357 = vmatpush1.msra.mxu0 0.0
        %358 = vmatprep.subr.mxu0 0.0
        %359 = vmatpush1.msra.mxu0 0.0
        %360 = vmatprep.subr.mxu0 0.0
        %361 = vmatpush1.msra.mxu0 0.0
        %362 = vmatprep.subr.mxu0 0.0
        %363 = vmatpush1.msra.mxu0 0.0
        %364 = vmatprep.subr.mxu0 0.0
        %365 = vmatpush1.msra.mxu0 0.0
        %366 = vmatprep.subr.mxu0 0.0
        %367 = vmatpush1.msra.mxu0 0.0
        %368 = vmatprep.subr.mxu0 %v330
        %369 = vmatpush1.msra.mxu0 %v327
        %370 = vmatprep.subr.mxu0 0.0
        %371 = vmatpush2.msra.mxu0 0.0
        %372 = vmatprep.subr.mxu0 0.0
        %373 = vmatpush2.msra.mxu0 0.0
        %374 = vmatprep.subr.mxu0 0.0
        %375 = vmatpush2.msra.mxu0 0.0
        %376 = vmatprep.subr.mxu0 0.0
        %377 = vmatpush2.msra.mxu0 0.0
        %378 = vmatprep.subr.mxu0 0.0
        %379 = vmatpush2.msra.mxu0 0.0
        %380 = vmatprep.subr.mxu0 0.0
        %381 = vmatpush2.msra.mxu0 0.0
        %382 = vmatprep.subr.mxu0 0.0
        %383 = vmatpush2.msra.mxu0 0.0
        %384 = vmatprep.subr.mxu0 0.0
        %385 = vmatpush2.msra.mxu0 0.0
        %386 = vmatprep.subr.mxu0 0.0
        %387 = vmatpush2.msra.mxu0 0.0
        %388 = vmatprep.subr.mxu0 0.0
        %389 = vmatpush2.msra.mxu0 0.0
        %390 = vmatprep.subr.mxu0 0.0
        %391 = vmatpush2.msra.mxu0 0.0
        %392 = vmatprep.subr.mxu0 0.0
        %393 = vmatpush2.msra.mxu0 0.0
        %394 = vmatprep.subr.mxu0 0.0
        %395 = vmatpush2.msra.mxu0 0.0
        %396 = vmatprep.subr.mxu0 0.0
        %397 = vmatpush2.msra.mxu0 0.0
        %398 = vmatprep.subr.mxu0 0.0
        %399 = vmatpush2.msra.mxu0 0.0
        %400 = vmatprep.subr.mxu0 0.0
        %401 = vmatpush2.msra.mxu0 0.0
        %402 = vmatprep.mubr.f32.mxu0 0.0
        %403 = vmatmul.mubr.f32.gmra.mxu0 %v314
        %v404 = vpop.f32.mrf.mxu0
        %v405 = vadd.f32 %v295, %v404
        %v406 = vpop.f32.mrf.mxu0
        %v407 = vadd.f32 %v295, %v406
        %408 = vmatprep.mubr.f32.mxu0 0.0
        %409 = vmatmul.mubr.f32.gmra.mxu0 %v317
        %v410 = vpop.f32.mrf.mxu0
        %v411 = vadd.f32 %v300, %v410
        %v412 = vpop.f32.mrf.mxu0
        %v413 = vadd.f32 %v300, %v412
        %414 = vmatprep.mubr.f32.mxu0 0.0
        %415 = vmatmul.mubr.f32.gmra.mxu0 %v320
        %v416 = vpop.f32.mrf.mxu0
        %v417 = vadd.f32 %v305, %v416
        %v418 = vpop.f32.mrf.mxu0
        %v419 = vadd.f32 %v305, %v418
        %420 = vmatprep.mubr.f32.mxu0 0.0
        %421 = vmatmul.mubr.f32.gmra.mxu0 %v323
        %v422 = vpop.f32.mrf.mxu0
        %v423 = vadd.f32 %v310, %v422
        %v424 = vpop.f32.mrf.mxu0
        %v425 = vadd.f32 %v310, %v424
        %426 = vdwg.mxu0
        %427 = vmatprep.subr.mxu0 0.0
        %428 = vmatpush1.msra.mxu0 0.0
        %429 = vmatprep.subr.mxu0 0.0
        %430 = vmatpush1.msra.mxu0 0.0
        %431 = vmatprep.subr.mxu0 0.0
        %432 = vmatpush1.msra.mxu0 0.0
        %433 = vmatprep.subr.mxu0 0.0
        %434 = vmatpush1.msra.mxu0 0.0
        %435 = vmatprep.subr.mxu0 0.0
        %436 = vmatpush1.msra.mxu0 0.0
        %437 = vmatprep.subr.mxu0 0.0
        %438 = vmatpush1.msra.mxu0 0.0
        %439 = vmatprep.subr.mxu0 0.0
        %440 = vmatpush1.msra.mxu0 0.0
        %441 = vmatprep.subr.mxu0 0.0
        %442 = vmatpush1.msra.mxu0 0.0
        %443 = vmatprep.subr.mxu0 0.0
        %444 = vmatpush1.msra.mxu0 0.0
        %445 = vmatprep.subr.mxu0 0.0
        %446 = vmatpush1.msra.mxu0 0.0
        %447 = vmatprep.subr.mxu0 0.0
        %448 = vmatpush1.msra.mxu0 0.0
        %449 = vmatprep.subr.mxu0 0.0
        %450 = vmatpush1.msra.mxu0 0.0
        %451 = vmatprep.subr.mxu0 0.0
        %452 = vmatpush1.msra.mxu0 0.0
        %453 = vmatprep.subr.mxu0 0.0
        %454 = vmatpush1.msra.mxu0 0.0
        %455 = vmatprep.subr.mxu0 0.0
        %456 = vmatpush1.msra.mxu0 0.0
        %457 = vmatprep.subr.mxu0 %v336
        %458 = vmatpush1.msra.mxu0 %v333
        %459 = vmatprep.subr.mxu0 0.0
        %460 = vmatpush2.msra.mxu0 0.0
        %461 = vmatprep.subr.mxu0 0.0
        %462 = vmatpush2.msra.mxu0 0.0
        %463 = vmatprep.subr.mxu0 0.0
        %464 = vmatpush2.msra.mxu0 0.0
        %465 = vmatprep.subr.mxu0 0.0
        %466 = vmatpush2.msra.mxu0 0.0
        %467 = vmatprep.subr.mxu0 0.0
        %468 = vmatpush2.msra.mxu0 0.0
        %469 = vmatprep.subr.mxu0 0.0
        %470 = vmatpush2.msra.mxu0 0.0
        %471 = vmatprep.subr.mxu0 0.0
        %472 = vmatpush2.msra.mxu0 0.0
        %473 = vmatprep.subr.mxu0 0.0
        %474 = vmatpush2.msra.mxu0 0.0
        %475 = vmatprep.subr.mxu0 0.0
        %476 = vmatpush2.msra.mxu0 0.0
        %477 = vmatprep.subr.mxu0 0.0
        %478 = vmatpush2.msra.mxu0 0.0
        %479 = vmatprep.subr.mxu0 0.0
        %480 = vmatpush2.msra.mxu0 0.0
        %481 = vmatprep.subr.mxu0 0.0
        %482 = vmatpush2.msra.mxu0 0.0
        %483 = vmatprep.subr.mxu0 0.0
        %484 = vmatpush2.msra.mxu0 0.0
        %485 = vmatprep.subr.mxu0 0.0
        %486 = vmatpush2.msra.mxu0 0.0
        %487 = vmatprep.subr.mxu0 0.0
        %488 = vmatpush2.msra.mxu0 0.0
        %489 = vmatprep.subr.mxu0 0.0
        %490 = vmatpush2.msra.mxu0 0.0
        %491 = vmatprep.mubr.f32.mxu0 0.0
        %492 = vmatmul.mubr.f32.gmra.mxu0 %v314
        %v493 = vpop.f32.mrf.mxu0
        %v494 = vadd.f32 %v295, %v493
        %v495 = vpop.f32.mrf.mxu0
        %v496 = vadd.f32 %v295, %v495
        %497 = vmatprep.mubr.f32.mxu0 0.0
        %498 = vmatmul.mubr.f32.gmra.mxu0 %v317
        %v499 = vpop.f32.mrf.mxu0
        %v500 = vadd.f32 %v300, %v499
        %v501 = vpop.f32.mrf.mxu0
        %v502 = vadd.f32 %v300, %v501
        %503 = vmatprep.mubr.f32.mxu0 0.0
        %504 = vmatmul.mubr.f32.gmra.mxu0 %v320
        %v505 = vpop.f32.mrf.mxu0
        %v506 = vadd.f32 %v305, %v505
        %v507 = vpop.f32.mrf.mxu0
        %v508 = vadd.f32 %v305, %v507
        %509 = vmatprep.mubr.f32.mxu0 0.0
        %510 = vmatmul.mubr.f32.gmra.mxu0 %v323
        %v511 = vpop.f32.mrf.mxu0
        %v512 = vadd.f32 %v310, %v511
        %v513 = vpop.f32.mrf.mxu0
        %v514 = vadd.f32 %v310, %v513
        %515 = vdwg.mxu0
        %v516 = vmax.f32 %v405, 0.0
        %v517 = vmax.f32 %v407, 0.0
        %v518 = vmax.f32 %v494, 0.0
        %v519 = vmax.f32 %v496, 0.0
        %v520 = vmax.f32 %v411, 0.0
        %v521 = vmax.f32 %v413, 0.0
        %v522 = vmax.f32 %v500, 0.0
        %v523 = vmax.f32 %v502, 0.0
        %v524 = vmax.f32 %v417, 0.0
        %v525 = vmax.f32 %v419, 0.0
        %v526 = vmax.f32 %v506, 0.0
        %v527 = vmax.f32 %v508, 0.0
        %v528 = vmax.f32 %v423, 0.0
        %v529 = vmax.f32 %v425, 0.0
        %v530 = vmax.f32 %v512, 0.0
        %v531 = vmax.f32 %v514, 0.0
        %v532 = vld [vmem:[%s3] sm:$0xff]
        %v533 = vld [vmem:[%s3 + $0x8] sm:$0xff]
        %v534 = vld [vmem:[%s3 + $0x10] sm:$0xff]
        %v535 = vld [vmem:[%s3 + $0x18] sm:$0xff]
        %v536 = vld [vmem:[%s4] sm:$0xff]
        %v537 = vld [vmem:[%s4 + $0x8] sm:$0xff]
        %v538 = vld [vmem:[%s4 + $0x10] sm:$0xff]
        %v539 = vld [vmem:[%s4 + $0x18] sm:$0xff]
        %541 = vset.pattern.permute.xlu0 0
        %542 = vperm.xlu0 %541, %v536
        %v543 = vpop.permute.xlu0 %542
        %546 = vset.pattern.permute.xlu0 0
        %547 = vperm.xlu0 %546, %v537
        %v548 = vpop.permute.xlu0 %547
        %551 = vset.pattern.permute.xlu0 0
        %552 = vperm.xlu0 %551, %v538
        %v553 = vpop.permute.xlu0 %552
        %556 = vset.pattern.permute.xlu0 0
        %557 = vperm.xlu0 %556, %v539
        %v558 = vpop.permute.xlu0 %557
        %vm560 = vcmask 261120
        %v562 = vsel %vm560, %v532, 0
        %v565 = vsel %vm560, %v533, 0
        %v568 = vsel %vm560, %v534, 0
        %v571 = vsel %vm560, %v535, 0
        %573 = vmatprep.subr.mxu0 0.0
        %574 = vmatpush1.msra.mxu0 0.0
        %575 = vmatprep.subr.mxu0 0.0
        %576 = vmatpush1.msra.mxu0 0.0
        %577 = vmatprep.subr.mxu0 0.0
        %578 = vmatpush1.msra.mxu0 0.0
        %579 = vmatprep.subr.mxu0 0.0
        %580 = vmatpush1.msra.mxu0 0.0
        %581 = vmatprep.subr.mxu0 0.0
        %582 = vmatpush1.msra.mxu0 0.0
        %583 = vmatprep.subr.mxu0 0.0
        %584 = vmatpush1.msra.mxu0 0.0
        %585 = vmatprep.subr.mxu0 0.0
        %586 = vmatpush1.msra.mxu0 0.0
        %587 = vmatprep.subr.mxu0 0.0
        %588 = vmatpush1.msra.mxu0 0.0
        %589 = vmatprep.subr.mxu0 0.0
        %590 = vmatpush1.msra.mxu0 0.0
        %591 = vmatprep.subr.mxu0 0.0
        %592 = vmatpush1.msra.mxu0 0.0
        %593 = vmatprep.subr.mxu0 0.0
        %594 = vmatpush1.msra.mxu0 0.0
        %595 = vmatprep.subr.mxu0 0.0
        %596 = vmatpush1.msra.mxu0 0.0
        %597 = vmatprep.subr.mxu0 %v529
        %598 = vmatpush1.msra.mxu0 %v528
        %599 = vmatprep.subr.mxu0 %v525
        %600 = vmatpush1.msra.mxu0 %v524
        %601 = vmatprep.subr.mxu0 %v521
        %602 = vmatpush1.msra.mxu0 %v520
        %603 = vmatprep.subr.mxu0 %v517
        %604 = vmatpush1.msra.mxu0 %v516
        %605 = vmatprep.subr.mxu0 0.0
        %606 = vmatpush2.msra.mxu0 0.0
        %607 = vmatprep.subr.mxu0 0.0
        %608 = vmatpush2.msra.mxu0 0.0
        %609 = vmatprep.subr.mxu0 0.0
        %610 = vmatpush2.msra.mxu0 0.0
        %611 = vmatprep.subr.mxu0 0.0
        %612 = vmatpush2.msra.mxu0 0.0
        %613 = vmatprep.subr.mxu0 0.0
        %614 = vmatpush2.msra.mxu0 0.0
        %615 = vmatprep.subr.mxu0 0.0
        %616 = vmatpush2.msra.mxu0 0.0
        %617 = vmatprep.subr.mxu0 0.0
        %618 = vmatpush2.msra.mxu0 0.0
        %619 = vmatprep.subr.mxu0 0.0
        %620 = vmatpush2.msra.mxu0 0.0
        %621 = vmatprep.subr.mxu0 0.0
        %622 = vmatpush2.msra.mxu0 0.0
        %623 = vmatprep.subr.mxu0 0.0
        %624 = vmatpush2.msra.mxu0 0.0
        %625 = vmatprep.subr.mxu0 0.0
        %626 = vmatpush2.msra.mxu0 0.0
        %627 = vmatprep.subr.mxu0 0.0
        %628 = vmatpush2.msra.mxu0 0.0
        %629 = vmatprep.subr.mxu0 0.0
        %630 = vmatpush2.msra.mxu0 0.0
        %631 = vmatprep.subr.mxu0 0.0
        %632 = vmatpush2.msra.mxu0 0.0
        %633 = vmatprep.subr.mxu0 0.0
        %634 = vmatpush2.msra.mxu0 0.0
        %635 = vmatprep.subr.mxu0 0.0
        %636 = vmatpush2.msra.mxu0 0.0
        %637 = vmatprep.mubr.f32.mxu0 0.0
        %638 = vmatmul.mubr.f32.gmra.mxu0 %v562
        %v639 = vpop.f32.mrf.mxu0
        %v640 = vadd.f32 %v543, %v639
        %v641 = vpop.f32.mrf.mxu0
        %v642 = vadd.f32 %v543, %v641
        %643 = vmatprep.mubr.f32.mxu0 0.0
        %644 = vmatmul.mubr.f32.gmra.mxu0 %v565
        %v645 = vpop.f32.mrf.mxu0
        %v646 = vadd.f32 %v548, %v645
        %v647 = vpop.f32.mrf.mxu0
        %v648 = vadd.f32 %v548, %v647
        %649 = vmatprep.mubr.f32.mxu0 0.0
        %650 = vmatmul.mubr.f32.gmra.mxu0 %v568
        %v651 = vpop.f32.mrf.mxu0
        %v652 = vadd.f32 %v553, %v651
        %v653 = vpop.f32.mrf.mxu0
        %v654 = vadd.f32 %v553, %v653
        %655 = vmatprep.mubr.f32.mxu0 0.0
        %656 = vmatmul.mubr.f32.gmra.mxu0 %v571
        %v657 = vpop.f32.mrf.mxu0
        %v658 = vadd.f32 %v558, %v657
        %v659 = vpop.f32.mrf.mxu0
        %v660 = vadd.f32 %v558, %v659
        %661 = vdwg.mxu0
        %662 = vmatprep.subr.mxu0 0.0
        %663 = vmatpush1.msra.mxu0 0.0
        %664 = vmatprep.subr.mxu0 0.0
        %665 = vmatpush1.msra.mxu0 0.0
        %666 = vmatprep.subr.mxu0 0.0
        %667 = vmatpush1.msra.mxu0 0.0
        %668 = vmatprep.subr.mxu0 0.0
        %669 = vmatpush1.msra.mxu0 0.0
        %670 = vmatprep.subr.mxu0 0.0
        %671 = vmatpush1.msra.mxu0 0.0
        %672 = vmatprep.subr.mxu0 0.0
        %673 = vmatpush1.msra.mxu0 0.0
        %674 = vmatprep.subr.mxu0 0.0
        %675 = vmatpush1.msra.mxu0 0.0
        %676 = vmatprep.subr.mxu0 0.0
        %677 = vmatpush1.msra.mxu0 0.0
        %678 = vmatprep.subr.mxu0 0.0
        %679 = vmatpush1.msra.mxu0 0.0
        %680 = vmatprep.subr.mxu0 0.0
        %681 = vmatpush1.msra.mxu0 0.0
        %682 = vmatprep.subr.mxu0 0.0
        %683 = vmatpush1.msra.mxu0 0.0
        %684 = vmatprep.subr.mxu0 0.0
        %685 = vmatpush1.msra.mxu0 0.0
        %686 = vmatprep.subr.mxu0 %v531
        %687 = vmatpush1.msra.mxu0 %v530
        %688 = vmatprep.subr.mxu0 %v527
        %689 = vmatpush1.msra.mxu0 %v526
        %690 = vmatprep.subr.mxu0 %v523
        %691 = vmatpush1.msra.mxu0 %v522
        %692 = vmatprep.subr.mxu0 %v519
        %693 = vmatpush1.msra.mxu0 %v518
        %694 = vmatprep.subr.mxu0 0.0
        %695 = vmatpush2.msra.mxu0 0.0
        %696 = vmatprep.subr.mxu0 0.0
        %697 = vmatpush2.msra.mxu0 0.0
        %698 = vmatprep.subr.mxu0 0.0
        %699 = vmatpush2.msra.mxu0 0.0
        %700 = vmatprep.subr.mxu0 0.0
        %701 = vmatpush2.msra.mxu0 0.0
        %702 = vmatprep.subr.mxu0 0.0
        %703 = vmatpush2.msra.mxu0 0.0
        %704 = vmatprep.subr.mxu0 0.0
        %705 = vmatpush2.msra.mxu0 0.0
        %706 = vmatprep.subr.mxu0 0.0
        %707 = vmatpush2.msra.mxu0 0.0
        %708 = vmatprep.subr.mxu0 0.0
        %709 = vmatpush2.msra.mxu0 0.0
        %710 = vmatprep.subr.mxu0 0.0
        %711 = vmatpush2.msra.mxu0 0.0
        %712 = vmatprep.subr.mxu0 0.0
        %713 = vmatpush2.msra.mxu0 0.0
        %714 = vmatprep.subr.mxu0 0.0
        %715 = vmatpush2.msra.mxu0 0.0
        %716 = vmatprep.subr.mxu0 0.0
        %717 = vmatpush2.msra.mxu0 0.0
        %718 = vmatprep.subr.mxu0 0.0
        %719 = vmatpush2.msra.mxu0 0.0
        %720 = vmatprep.subr.mxu0 0.0
        %721 = vmatpush2.msra.mxu0 0.0
        %722 = vmatprep.subr.mxu0 0.0
        %723 = vmatpush2.msra.mxu0 0.0
        %724 = vmatprep.subr.mxu0 0.0
        %725 = vmatpush2.msra.mxu0 0.0
        %726 = vmatprep.mubr.f32.mxu0 0.0
        %727 = vmatmul.mubr.f32.gmra.mxu0 %v562
        %v728 = vpop.f32.mrf.mxu0
        %v729 = vadd.f32 %v543, %v728
        %v730 = vpop.f32.mrf.mxu0
        %v731 = vadd.f32 %v543, %v730
        %732 = vmatprep.mubr.f32.mxu0 0.0
        %733 = vmatmul.mubr.f32.gmra.mxu0 %v565
        %v734 = vpop.f32.mrf.mxu0
        %v735 = vadd.f32 %v548, %v734
        %v736 = vpop.f32.mrf.mxu0
        %v737 = vadd.f32 %v548, %v736
        %738 = vmatprep.mubr.f32.mxu0 0.0
        %739 = vmatmul.mubr.f32.gmra.mxu0 %v568
        %v740 = vpop.f32.mrf.mxu0
        %v741 = vadd.f32 %v553, %v740
        %v742 = vpop.f32.mrf.mxu0
        %v743 = vadd.f32 %v553, %v742
        %744 = vmatprep.mubr.f32.mxu0 0.0
        %745 = vmatmul.mubr.f32.gmra.mxu0 %v571
        %v746 = vpop.f32.mrf.mxu0
        %v747 = vadd.f32 %v558, %v746
        %v748 = vpop.f32.mrf.mxu0
        %v749 = vadd.f32 %v558, %v748
        %750 = vdwg.mxu0
        %v751 = vmax.f32 %v640, 0.0
        %v752 = vmax.f32 %v642, 0.0
        %v753 = vmax.f32 %v729, 0.0
        %v754 = vmax.f32 %v731, 0.0
        %v755 = vmax.f32 %v646, 0.0
        %v756 = vmax.f32 %v648, 0.0
        %v757 = vmax.f32 %v735, 0.0
        %v758 = vmax.f32 %v737, 0.0
        %v759 = vmax.f32 %v652, 0.0
        %v760 = vmax.f32 %v654, 0.0
        %v761 = vmax.f32 %v741, 0.0
        %v762 = vmax.f32 %v743, 0.0
        %v763 = vmax.f32 %v658, 0.0
        %v764 = vmax.f32 %v660, 0.0
        %v765 = vmax.f32 %v747, 0.0
        %v766 = vmax.f32 %v749, 0.0
        %v767 = vld [vmem:[%s5] sm:$0xf]
        %v768 = vld [vmem:[%s6] sm:$0xf]
        %770 = vset.pattern.permute.xlu0 0
        %771 = vperm.xlu0 %770, %v768
        %v772 = vpop.permute.xlu0 %771
        %v775 = vsel %vm560, %v767, 0
        %777 = vmatprep.subr.mxu0 0.0
        %778 = vmatpush1.msra.mxu0 0.0
        %779 = vmatprep.subr.mxu0 0.0
        %780 = vmatpush1.msra.mxu0 0.0
        %781 = vmatprep.subr.mxu0 0.0
        %782 = vmatpush1.msra.mxu0 0.0
        %783 = vmatprep.subr.mxu0 0.0
        %784 = vmatpush1.msra.mxu0 0.0
        %785 = vmatprep.subr.mxu0 0.0
        %786 = vmatpush1.msra.mxu0 0.0
        %787 = vmatprep.subr.mxu0 0.0
        %788 = vmatpush1.msra.mxu0 0.0
        %789 = vmatprep.subr.mxu0 0.0
        %790 = vmatpush1.msra.mxu0 0.0
        %791 = vmatprep.subr.mxu0 0.0
        %792 = vmatpush1.msra.mxu0 0.0
        %793 = vmatprep.subr.mxu0 0.0
        %794 = vmatpush1.msra.mxu0 0.0
        %795 = vmatprep.subr.mxu0 0.0
        %796 = vmatpush1.msra.mxu0 0.0
        %797 = vmatprep.subr.mxu0 0.0
        %798 = vmatpush1.msra.mxu0 0.0
        %799 = vmatprep.subr.mxu0 0.0
        %800 = vmatpush1.msra.mxu0 0.0
        %801 = vmatprep.subr.mxu0 %v764
        %802 = vmatpush1.msra.mxu0 %v763
        %803 = vmatprep.subr.mxu0 %v760
        %804 = vmatpush1.msra.mxu0 %v759
        %805 = vmatprep.subr.mxu0 %v756
        %806 = vmatpush1.msra.mxu0 %v755
        %807 = vmatprep.subr.mxu0 %v752
        %808 = vmatpush1.msra.mxu0 %v751
        %809 = vmatprep.subr.mxu0 0.0
        %810 = vmatpush2.msra.mxu0 0.0
        %811 = vmatprep.subr.mxu0 0.0
        %812 = vmatpush2.msra.mxu0 0.0
        %813 = vmatprep.subr.mxu0 0.0
        %814 = vmatpush2.msra.mxu0 0.0
        %815 = vmatprep.subr.mxu0 0.0
        %816 = vmatpush2.msra.mxu0 0.0
        %817 = vmatprep.subr.mxu0 0.0
        %818 = vmatpush2.msra.mxu0 0.0
        %819 = vmatprep.subr.mxu0 0.0
        %820 = vmatpush2.msra.mxu0 0.0
        %821 = vmatprep.subr.mxu0 0.0
        %822 = vmatpush2.msra.mxu0 0.0
        %823 = vmatprep.subr.mxu0 0.0
        %824 = vmatpush2.msra.mxu0 0.0
        %825 = vmatprep.subr.mxu0 0.0
        %826 = vmatpush2.msra.mxu0 0.0
        %827 = vmatprep.subr.mxu0 0.0
        %828 = vmatpush2.msra.mxu0 0.0
        %829 = vmatprep.subr.mxu0 0.0
        %830 = vmatpush2.msra.mxu0 0.0
        %831 = vmatprep.subr.mxu0 0.0
        %832 = vmatpush2.msra.mxu0 0.0
        %833 = vmatprep.subr.mxu0 0.0
        %834 = vmatpush2.msra.mxu0 0.0
        %835 = vmatprep.subr.mxu0 0.0
        %836 = vmatpush2.msra.mxu0 0.0
        %837 = vmatprep.subr.mxu0 0.0
        %838 = vmatpush2.msra.mxu0 0.0
        %839 = vmatprep.subr.mxu0 0.0
        %840 = vmatpush2.msra.mxu0 0.0
        %841 = vmatprep.mubr.f32.mxu0 0.0
        %842 = vmatmul.mubr.f32.gmra.mxu0 %v775
        %v843 = vpop.f32.mrf.mxu0
        %v844 = vadd.f32 %v772, %v843
        %v845 = vpop.f32.mrf.mxu0
        %v846 = vadd.f32 %v772, %v845
        %847 = vdwg.mxu0
        %848 = vmatprep.subr.mxu0 0.0
        %849 = vmatpush1.msra.mxu0 0.0
        %850 = vmatprep.subr.mxu0 0.0
        %851 = vmatpush1.msra.mxu0 0.0
        %852 = vmatprep.subr.mxu0 0.0
        %853 = vmatpush1.msra.mxu0 0.0
        %854 = vmatprep.subr.mxu0 0.0
        %855 = vmatpush1.msra.mxu0 0.0
        %856 = vmatprep.subr.mxu0 0.0
        %857 = vmatpush1.msra.mxu0 0.0
        %858 = vmatprep.subr.mxu0 0.0
        %859 = vmatpush1.msra.mxu0 0.0
        %860 = vmatprep.subr.mxu0 0.0
        %861 = vmatpush1.msra.mxu0 0.0
        %862 = vmatprep.subr.mxu0 0.0
        %863 = vmatpush1.msra.mxu0 0.0
        %864 = vmatprep.subr.mxu0 0.0
        %865 = vmatpush1.msra.mxu0 0.0
        %866 = vmatprep.subr.mxu0 0.0
        %867 = vmatpush1.msra.mxu0 0.0
        %868 = vmatprep.subr.mxu0 0.0
        %869 = vmatpush1.msra.mxu0 0.0
        %870 = vmatprep.subr.mxu0 0.0
        %871 = vmatpush1.msra.mxu0 0.0
        %872 = vmatprep.subr.mxu0 %v766
        %873 = vmatpush1.msra.mxu0 %v765
        %874 = vmatprep.subr.mxu0 %v762
        %875 = vmatpush1.msra.mxu0 %v761
        %876 = vmatprep.subr.mxu0 %v758
        %877 = vmatpush1.msra.mxu0 %v757
        %878 = vmatprep.subr.mxu0 %v754
        %879 = vmatpush1.msra.mxu0 %v753
        %880 = vmatprep.subr.mxu0 0.0
        %881 = vmatpush2.msra.mxu0 0.0
        %882 = vmatprep.subr.mxu0 0.0
        %883 = vmatpush2.msra.mxu0 0.0
        %884 = vmatprep.subr.mxu0 0.0
        %885 = vmatpush2.msra.mxu0 0.0
        %886 = vmatprep.subr.mxu0 0.0
        %887 = vmatpush2.msra.mxu0 0.0
        %888 = vmatprep.subr.mxu0 0.0
        %889 = vmatpush2.msra.mxu0 0.0
        %890 = vmatprep.subr.mxu0 0.0
        %891 = vmatpush2.msra.mxu0 0.0
        %892 = vmatprep.subr.mxu0 0.0
        %893 = vmatpush2.msra.mxu0 0.0
        %894 = vmatprep.subr.mxu0 0.0
        %895 = vmatpush2.msra.mxu0 0.0
        %896 = vmatprep.subr.mxu0 0.0
        %897 = vmatpush2.msra.mxu0 0.0
        %898 = vmatprep.subr.mxu0 0.0
        %899 = vmatpush2.msra.mxu0 0.0
        %900 = vmatprep.subr.mxu0 0.0
        %901 = vmatpush2.msra.mxu0 0.0
        %902 = vmatprep.subr.mxu0 0.0
        %903 = vmatpush2.msra.mxu0 0.0
        %904 = vmatprep.subr.mxu0 0.0
        %905 = vmatpush2.msra.mxu0 0.0
        %906 = vmatprep.subr.mxu0 0.0
        %907 = vmatpush2.msra.mxu0 0.0
        %908 = vmatprep.subr.mxu0 0.0
        %909 = vmatpush2.msra.mxu0 0.0
        %910 = vmatprep.subr.mxu0 0.0
        %911 = vmatpush2.msra.mxu0 0.0
        %912 = vmatprep.mubr.f32.mxu0 0.0
        %913 = vmatmul.mubr.f32.gmra.mxu0 %v775
        %v914 = vpop.f32.mrf.mxu0
        %v915 = vadd.f32 %v772, %v914
        %v916 = vpop.f32.mrf.mxu0
        %v917 = vadd.f32 %v772, %v916
        %918 = vdwg.mxu0
        %v923 = vcombine.low %v844, %v846
        %v924 = vcombine.low %v915, %v917
        %927 = vst [vmem:[%s272] sm:$0xff] %v923
        %928 = vst [vmem:[%s272 + $0x8] sm:$0xff] %v924
        %s929 = sand.u32 %s181, 1
        %s930 = scalar_lea.sflag [#allocation3], %s929
        %s931 = sand.u32 %s181, 1
        %s932 = smul.addr %s931, 16
        %s933 = scalar_lea.vmem [#allocation2], %s932
        // Predicated region
        $region49: #{tpu_custom_call.1} parent=47 // pred_check
          %p934 = pneg %p191
        $region50: #{tpu_custom_call.1} parent=47 // pred_check_branch
          %936 = sbr.rel (%p934) target = $region52
        $region51: #{tpu_custom_call.1} parent=47 // pred_region
          %s937 = smul.u32 4, %s21
          %s939 = ssub.s32 256, 256
          %940 = vsyncadd %s930, %s939
          %s941 = smul.addr %s937, 64
          %s942 = scalar_lea.hbm %s7, %s941
          %s944 = sshll.u32 %s933, 4
          %s945 = int_to_ptr.vmem [resolvable:$true] %s944
          %947 = dma.vmem_to_hbm [thread:$0]  %s945, 256, %s942, %s930
        $region52: #{tpu_custom_call.1} parent=47 // pred_fallthru
          _
      $region48: #{tpu_custom_call.1} parent=5 // pred_fallthru
        _
      %p948 = scmp.le.s32.totalorder 2, %s16
      // Predicated region
      $region53: #{tpu_custom_call.1} parent=5 // pred_check
        %p949 = pneg %p948
      $region54: #{tpu_custom_call.1} parent=5 // pred_check_branch
        %951 = sbr.rel (%p949) target = $region56
      $region55: #{tpu_custom_call.1} parent=5 // pred_region
        %s952 = ssub.s32 %s16, 2
        // Predicated region
        $region57: #{tpu_custom_call.1} parent=55 // pred_check
          %p953 = pneg %p197
        $region58: #{tpu_custom_call.1} parent=55 // pred_check_branch
          %955 = sbr.rel (%p953) target = $region60
        $region59: #{tpu_custom_call.1} parent=55 // pred_region
          %s956 = sand.u32 %s182, 1
          %s957 = scalar_lea.sflag [#allocation3], %s956
          %s958 = sand.u32 %s182, 1
          %s959 = smul.addr %s958, 16
          %s960 = scalar_lea.vmem [#allocation2], %s959
          %961 = dma.done %s957, 256
        $region60: #{tpu_custom_call.1} parent=55 // pred_fallthru
          _
      $region56: #{tpu_custom_call.1} parent=5 // pred_fallthru
        _
    $region6: #{tpu_custom_call.1} parent=1 // loop_footer
      %s20 = sadd.s32 1, %s16
    $region7: #{tpu_custom_call.1} parent=1 // loop_footer_branch
      %15 = sbr.rel target = $region3
    $region8: #{tpu_custom_call.1} parent=1 // loop_exit
      _
    %962 = vsyncpa [#allocation3], 1
    %s963 = scalar_lea.sflag [#allocation3], 1
    %964 = vsyncpa %s963, 1

</llo_original>
